<compile_context>
chip_gen: v5e
topology: v5e:2x2
jax: 0.10.0
libtpu: 0.0.40
codegen_flags: <defaults>
</compile_context>

<pallas_src>
import functools

import jax
import jax.numpy as jnp
from jax.experimental import pallas as pl
from jax.experimental.pallas import tpu as pltpu


def attention1_kernel(q_ref, k_ref, v_ref, wout_ref, bout_ref, o_ref,
                      m_sc, l_sc, acc_sc, *, heads):
    # q_ref:    (H, tq, d)  bf16, softmax scale already folded in
    # k_ref:    (H, tk, d)  bf16
    # v_ref:    (H, tk, d)  bf16
    # wout_ref: (H, d,  D)  bf16 (head-major output-projection weight)
    # bout_ref: (1, D)      f32
    # o_ref:    (tq, D)
    # m_sc/l_sc:(H, tq, 1)  f32 scratch; acc_sc: (H, tq, d) f32 scratch
    ki = pl.program_id(1)

    @pl.when(ki == 0)
    def _():
        m_sc[...] = jnp.full_like(m_sc, -jnp.inf)
        l_sc[...] = jnp.zeros_like(l_sc)
        acc_sc[...] = jnp.zeros_like(acc_sc)

    q = q_ref[...]
    k = k_ref[...]
    v = v_ref[...]

    # Batched per-head dots on the MXU, f32 accumulate. (H, tq, tk)
    s = jnp.einsum('hqd,hkd->hqk', q, k, preferred_element_type=jnp.float32)

    # Online (flash) softmax update.
    m_prev = m_sc[...]
    m_new = jnp.maximum(m_prev, jnp.max(s, axis=-1, keepdims=True))
    alpha = jnp.exp(m_prev - m_new)
    p = jnp.exp(s - m_new)
    l_sc[...] = alpha * l_sc[...] + jnp.sum(p, axis=-1, keepdims=True)
    acc_sc[...] = alpha * acc_sc[...] + jnp.einsum(
        'hqk,hkd->hqd', p.astype(v.dtype), v,
        preferred_element_type=jnp.float32)
    m_sc[...] = m_new

    @pl.when(ki == pl.num_programs(1) - 1)
    def _():
        # Deferred normalization on the small (H, tq, d) accumulator;
        # reciprocal goes to the EUP slot.
        ctx = acc_sc[...] * pl.reciprocal(l_sc[...], approx=True)
        ctx = ctx.astype(wout_ref.dtype)                     # bf16 MXU operand
        tq, D = o_ref.shape
        out = jnp.zeros((tq, D), jnp.float32)
        for h in range(heads):                               # static unroll, no concat
            out = out + jnp.dot(ctx[h], wout_ref[h],
                                preferred_element_type=jnp.float32)
        o_ref[...] = (out + bout_ref[...]).astype(o_ref.dtype)


def _pick_q_tile(n):
    # Largest power-of-two tile (<=512) that divides N and still leaves >=2
    # grid steps, so the "parallel" axis can shard across v7x's 2 TensorCores.
    for tq in (512, 256, 128, 64, 32, 16, 8):
        if n % tq == 0 and n // tq >= 2:
            return tq
    return n


def _pick_kv_tile(n):
    # KV tiling bounds the (H, tq, tk) softmax intermediates (flash-style);
    # fall back to the whole sequence for small / irregular N.
    for tk in (512, 256, 128):
        if n % tk == 0:
            return tk
    return n


def _vmem_limit_bytes():
    # Generation-aware: ~110 MiB on v5e/v6e (128 MiB physical), ~54 MiB on v7x
    # (64 MiB per TensorCore). Fall back to a conservative 64 MiB.
    try:
        cap = pltpu.get_tpu_info().vmem_capacity_bytes
        return min(int(cap * 0.85), 110 << 20)
    except Exception:
        return 64 << 20


def attention1(x, w_qkv, b_qkv, w_out, b_out, heads,
               *, compute_dtype=jnp.bfloat16):
    """x: [N, D]; w_qkv: [D, 3D]; b_qkv: [3D]; w_out: [D, D]; b_out: [D].

    Weights are stored [in, out] (transpose of PyTorch nn.Linear.weight), so
    the math is x @ W + b, matching the module's forward.
    """
    N, D = x.shape
    assert D % heads == 0
    d = D // heads
    scale = float(D) ** -0.5                 # dim ** -0.5, as in the module

    # ---- QKV projection hoisted out of the kernel (done ONCE, not per tile).
    # Plain XLA matmul in f32; scale folded into Q so the kernel never touches
    # the (tq, tk) dots with a multiply.
    qkv = x @ w_qkv + b_qkv
    q, k, v = jnp.split(qkv, 3, axis=-1)
    q = q * scale

    def to_heads(t):                          # (N, D) -> (heads, N, d)
        return t.reshape(N, heads, d).transpose(1, 0, 2)

    q_h = to_heads(q).astype(compute_dtype)
    k_h = to_heads(k).astype(compute_dtype)
    v_h = to_heads(v).astype(compute_dtype)

    # Output projection weight in head-major layout so the kernel can fold the
    # head-merge into per-head matmuls (no concatenate / transpose in-kernel).
    w_out_h = w_out.reshape(heads, d, D).astype(compute_dtype)
    b_out_2d = b_out.reshape(1, D).astype(jnp.float32)

    tq = _pick_q_tile(N)
    tk = _pick_kv_tile(N)
    grid = (pl.cdiv(N, tq), pl.cdiv(N, tk))

    kernel = functools.partial(attention1_kernel, heads=heads)

    out = pl.pallas_call(
        kernel,
        out_shape=jax.ShapeDtypeStruct((N, D), x.dtype),
        grid_spec=pltpu.PrefetchScalarGridSpec(
            num_scalar_prefetch=0,
            grid=grid,
            in_specs=[
                pl.BlockSpec((heads, tq, d), lambda qi, ki: (0, qi, 0)),  # Q tile
                pl.BlockSpec((heads, tk, d), lambda qi, ki: (0, ki, 0)),  # K tile
                pl.BlockSpec((heads, tk, d), lambda qi, ki: (0, ki, 0)),  # V tile
                pl.BlockSpec((heads, d, D), lambda qi, ki: (0, 0, 0)),    # W_out (resident)
                pl.BlockSpec((1, D), lambda qi, ki: (0, 0)),              # b_out (resident)
            ],
            out_specs=pl.BlockSpec((tq, D), lambda qi, ki: (qi, 0)),
            scratch_shapes=[
                pltpu.VMEM((heads, tq, 1), jnp.float32),   # m (running max)
                pltpu.VMEM((heads, tq, 1), jnp.float32),   # l (running sum)
                pltpu.VMEM((heads, tq, d), jnp.float32),   # acc (unnormalized P@V)
            ],
        ),
        compiler_params=pltpu.CompilerParams(
            dimension_semantics=("parallel", "arbitrary"),
            vmem_limit_bytes=_vmem_limit_bytes(),
        ),
    )(q_h, k_h, v_h, w_out_h, b_out_2d)

    return out


def _reference(x, w_qkv, b_qkv, w_out, b_out, heads):
    N, D = x.shape
    d = D // heads
    scale = float(D) ** -0.5
    qkv = x @ w_qkv + b_qkv
    q, k, v = jnp.split(qkv, 3, axis=-1)

    def split_heads(t):
        return t.reshape(N, heads, d).transpose(1, 0, 2)   # (h, n, d)

    q, k, v = map(split_heads, (q, k, v))
    dots = jnp.einsum("hid,hjd->hij", q, k) * scale
    attn = jax.nn.softmax(dots, axis=-1)
    out = jnp.einsum("hij,hjd->hid", attn, v)
    out = out.transpose(1, 0, 2).reshape(N, D)
    return out @ w_out + b_out


if __name__ == "__main__":
    N, DIM, HEADS = 16, 32, 4                     # dim=32, heads=4 (head_dim=8)

    key = jax.random.PRNGKey(0)
    kx, k1, k2, k3, k4 = jax.random.split(key, 5)

    x = jax.random.normal(kx, (N, DIM), dtype=jnp.float32)

    # Deterministic parameter init (PyTorch Linear-style uniform bounds).
    bound = 1.0 / (DIM ** 0.5)
    w_qkv = jax.random.uniform(k1, (DIM, 3 * DIM), jnp.float32, -bound, bound)
    b_qkv = jax.random.uniform(k2, (3 * DIM,), jnp.float32, -bound, bound)
    w_out = jax.random.uniform(k3, (DIM, DIM), jnp.float32, -bound, bound)
    b_out = jax.random.uniform(k4, (DIM,), jnp.float32, -bound, bound)

    out = attention1(x, w_qkv, b_qkv, w_out, b_out, HEADS)
    out = jax.block_until_ready(out)

    ref = _reference(x, w_qkv, b_qkv, w_out, b_out, HEADS)
    assert out.shape == (N, DIM)
    max_err = float(jnp.max(jnp.abs(out - ref)))
    # bf16 MXU operands + approx reciprocal -> loosened tolerance (per review).
    assert jnp.allclose(out, ref, atol=3e-2, rtol=3e-2), (
        f"mismatch vs JAX reference (max abs err {max_err})")

    print("KERNEL_OK")
</pallas_src>

<mosaic_0001>
module attributes {stable_mosaic.version = 11 : i64} {
  func.func @attention1_kernel(%arg0: i32, %arg1: i32, %arg2: memref<4x8x8xbf16, #tpu.memory_space<vmem>>, %arg3: memref<4x16x8xbf16, #tpu.memory_space<vmem>>, %arg4: memref<4x16x8xbf16, #tpu.memory_space<vmem>>, %arg5: memref<4x8x32xbf16, #tpu.memory_space<vmem>>, %arg6: memref<1x32xf32, #tpu.memory_space<vmem>>, %arg7: memref<8x32xf32, #tpu.memory_space<vmem>>, %arg8: memref<4x8x1xf32, #tpu.memory_space<vmem>>, %arg9: memref<4x8x1xf32, #tpu.memory_space<vmem>>, %arg10: memref<4x8x8xf32, #tpu.memory_space<vmem>>) attributes {dimension_semantics = [#tpu.dimension_semantics<parallel>, #tpu.dimension_semantics<arbitrary>], iteration_bounds = array<i64: 2, 1>, scalar_prefetch = 0 : i64, scratch_operands = 3 : i64, tpu.core_type = #tpu.core_type<tc>, window_params = [{transform_indices = @transform_0, window_bounds = array<i64: 4, 8, 8>}, {transform_indices = @transform_1, window_bounds = array<i64: 4, 16, 8>}, {transform_indices = @transform_2, window_bounds = array<i64: 4, 16, 8>}, {pipeline_mode = #tpu.pipeline_mode<synchronous>, transform_indices = @transform_3, window_bounds = array<i64: 4, 8, 32>}, {pipeline_mode = #tpu.pipeline_mode<synchronous>, transform_indices = @transform_4, window_bounds = array<i64: 1, 32>}, {transform_indices = @transform_5, window_bounds = array<i64: 8, 32>}]} {
    %c0_i32 = arith.constant 0 : i32
    %0 = arith.cmpi eq, %arg1, %c0_i32 : i32
    %1 = arith.extui %0 : i1 to i32
    %c0_i32_0 = arith.constant 0 : i32
    %2 = arith.cmpi ne, %1, %c0_i32_0 : i32
    scf.if %2 {
      %cst_32 = arith.constant 0xFF800000 : f32
      %33 = vector.broadcast %cst_32 : f32 to vector<4x8x1xf32>
      %c0_33 = arith.constant 0 : index
      %c0_34 = arith.constant 0 : index
      %c0_35 = arith.constant 0 : index
      %34 = vector.load %arg8[%c0_33, %c0_34, %c0_35] : memref<4x8x1xf32, #tpu.memory_space<vmem>>, vector<4x8x1xf32>
      tpu.vector_store %arg8[%c0_33, %c0_34, %c0_35], %33 {strides = array<i32>} : memref<4x8x1xf32, #tpu.memory_space<vmem>>, vector<4x8x1xf32>,
      %cst_36 = arith.constant 0.000000e+00 : f32
      %35 = vector.broadcast %cst_36 : f32 to vector<4x8x1xf32>
      %c0_37 = arith.constant 0 : index
      %c0_38 = arith.constant 0 : index
      %c0_39 = arith.constant 0 : index
      %36 = vector.load %arg9[%c0_37, %c0_38, %c0_39] : memref<4x8x1xf32, #tpu.memory_space<vmem>>, vector<4x8x1xf32>
      tpu.vector_store %arg9[%c0_37, %c0_38, %c0_39], %35 {strides = array<i32>} : memref<4x8x1xf32, #tpu.memory_space<vmem>>, vector<4x8x1xf32>,
      %cst_40 = arith.constant 0.000000e+00 : f32
      %37 = vector.broadcast %cst_40 : f32 to vector<4x8x8xf32>
      %c0_41 = arith.constant 0 : index
      %c0_42 = arith.constant 0 : index
      %c0_43 = arith.constant 0 : index
      %38 = vector.load %arg10[%c0_41, %c0_42, %c0_43] : memref<4x8x8xf32, #tpu.memory_space<vmem>>, vector<4x8x8xf32>
      tpu.vector_store %arg10[%c0_41, %c0_42, %c0_43], %37 {strides = array<i32>} : memref<4x8x8xf32, #tpu.memory_space<vmem>>, vector<4x8x8xf32>,
    } else {
    }
    %c0 = arith.constant 0 : index
    %c0_1 = arith.constant 0 : index
    %c0_2 = arith.constant 0 : index
    %3 = vector.load %arg2[%c0, %c0_1, %c0_2] : memref<4x8x8xbf16, #tpu.memory_space<vmem>>, vector<4x8x8xbf16>
    %c0_3 = arith.constant 0 : index
    %c0_4 = arith.constant 0 : index
    %c0_5 = arith.constant 0 : index
    %4 = vector.load %arg3[%c0_3, %c0_4, %c0_5] : memref<4x16x8xbf16, #tpu.memory_space<vmem>>, vector<4x16x8xbf16>
    %c0_6 = arith.constant 0 : index
    %c0_7 = arith.constant 0 : index
    %c0_8 = arith.constant 0 : index
    %5 = vector.load %arg4[%c0_6, %c0_7, %c0_8] : memref<4x16x8xbf16, #tpu.memory_space<vmem>>, vector<4x16x8xbf16>
    "tpu.trace_start"() <{level = 10 : i32, message = "hqd,hkd->hqk"}> : () -> ()
    %cst = arith.constant dense<0.000000e+00> : vector<4x8x16xf32>
    %6 = tpu.matmul %3, %4, %cst {dimension_numbers = #tpu.dot_dimension_numbers<[2], [2], [1], [1], [0, 0, 0, 1, 1, 1], [0], [0]>} : vector<4x8x8xbf16>, vector<4x16x8xbf16>, vector<4x8x16xf32> -> vector<4x8x16xf32>
    "tpu.trace_stop"() : () -> ()
    %c0_9 = arith.constant 0 : index
    %c0_10 = arith.constant 0 : index
    %c0_11 = arith.constant 0 : index
    %7 = vector.load %arg8[%c0_9, %c0_10, %c0_11] : memref<4x8x1xf32, #tpu.memory_space<vmem>>, vector<4x8x1xf32>
    %cst_12 = arith.constant dense<0xFF800000> : vector<4x8xf32>
    %8 = vector.multi_reduction <maximumf>, %6, %cst_12 [2] : vector<4x8x16xf32> to vector<4x8xf32>
    %9 = vector.shape_cast %8 : vector<4x8xf32> to vector<4x8x1xf32>
    %10 = arith.maximumf %7, %9 : vector<4x8x1xf32>
    %11 = arith.subf %7, %10 : vector<4x8x1xf32>
    %12 = math.exp %11 : vector<4x8x1xf32>
    %13 = vector.broadcast %10 : vector<4x8x1xf32> to vector<4x8x16xf32>
    %14 = arith.subf %6, %13 : vector<4x8x16xf32>
    %15 = math.exp %14 : vector<4x8x16xf32>
    %c0_13 = arith.constant 0 : index
    %c0_14 = arith.constant 0 : index
    %c0_15 = arith.constant 0 : index
    %16 = vector.load %arg9[%c0_13, %c0_14, %c0_15] : memref<4x8x1xf32, #tpu.memory_space<vmem>>, vector<4x8x1xf32>
    %17 = arith.mulf %12, %16 : vector<4x8x1xf32>
    %cst_16 = arith.constant dense<0.000000e+00> : vector<4x8xf32>
    %18 = vector.multi_reduction <add>, %15, %cst_16 [2] : vector<4x8x16xf32> to vector<4x8xf32>
    %19 = vector.shape_cast %18 : vector<4x8xf32> to vector<4x8x1xf32>
    %20 = arith.addf %17, %19 : vector<4x8x1xf32>
    %c0_17 = arith.constant 0 : index
    %c0_18 = arith.constant 0 : index
    %c0_19 = arith.constant 0 : index
    %21 = vector.load %arg9[%c0_17, %c0_18, %c0_19] : memref<4x8x1xf32, #tpu.memory_space<vmem>>, vector<4x8x1xf32>
    tpu.vector_store %arg9[%c0_17, %c0_18, %c0_19], %20 {strides = array<i32>} : memref<4x8x1xf32, #tpu.memory_space<vmem>>, vector<4x8x1xf32>,
    %c0_20 = arith.constant 0 : index
    %c0_21 = arith.constant 0 : index
    %c0_22 = arith.constant 0 : index
    %22 = vector.load %arg10[%c0_20, %c0_21, %c0_22] : memref<4x8x8xf32, #tpu.memory_space<vmem>>, vector<4x8x8xf32>
    %23 = vector.broadcast %12 : vector<4x8x1xf32> to vector<4x8x8xf32>
    %24 = arith.mulf %23, %22 : vector<4x8x8xf32>
    %25 = arith.truncf %15 : vector<4x8x16xf32> to vector<4x8x16xbf16>
    "tpu.trace_start"() <{level = 10 : i32, message = "hqk,hkd->hqd"}> : () -> ()
    %cst_23 = arith.constant dense<0.000000e+00> : vector<4x8x8xf32>
    %26 = tpu.matmul %25, %5, %cst_23 {dimension_numbers = #tpu.dot_dimension_numbers<[2], [1], [1], [2], [0, 0, 0, 1, 1, 2], [0], [0]>} : vector<4x8x16xbf16>, vector<4x16x8xbf16>, vector<4x8x8xf32> -> vector<4x8x8xf32>
    "tpu.trace_stop"() : () -> ()
    %27 = arith.addf %24, %26 : vector<4x8x8xf32>
    %c0_24 = arith.constant 0 : index
    %c0_25 = arith.constant 0 : index
    %c0_26 = arith.constant 0 : index
    %28 = vector.load %arg10[%c0_24, %c0_25, %c0_26] : memref<4x8x8xf32, #tpu.memory_space<vmem>>, vector<4x8x8xf32>
    tpu.vector_store %arg10[%c0_24, %c0_25, %c0_26], %27 {strides = array<i32>} : memref<4x8x8xf32, #tpu.memory_space<vmem>>, vector<4x8x8xf32>,
    %c0_27 = arith.constant 0 : index
    %c0_28 = arith.constant 0 : index
    %c0_29 = arith.constant 0 : index
    %29 = vector.load %arg8[%c0_27, %c0_28, %c0_29] : memref<4x8x1xf32, #tpu.memory_space<vmem>>, vector<4x8x1xf32>
    tpu.vector_store %arg8[%c0_27, %c0_28, %c0_29], %10 {strides = array<i32>} : memref<4x8x1xf32, #tpu.memory_space<vmem>>, vector<4x8x1xf32>,
    %c0_i32_30 = arith.constant 0 : i32
    %30 = arith.cmpi eq, %arg1, %c0_i32_30 : i32
    %31 = arith.extui %30 : i1 to i32
    %c0_i32_31 = arith.constant 0 : i32
    %32 = arith.cmpi ne, %31, %c0_i32_31 : i32
    scf.if %32 {
      %c0_32 = arith.constant 0 : index
      %c0_33 = arith.constant 0 : index
      %c0_34 = arith.constant 0 : index
      %33 = vector.load %arg10[%c0_32, %c0_33, %c0_34] : memref<4x8x8xf32, #tpu.memory_space<vmem>>, vector<4x8x8xf32>
      %c0_35 = arith.constant 0 : index
      %c0_36 = arith.constant 0 : index
      %c0_37 = arith.constant 0 : index
      %34 = vector.load %arg9[%c0_35, %c0_36, %c0_37] : memref<4x8x1xf32, #tpu.memory_space<vmem>>, vector<4x8x1xf32>
      %35 = tpu.reciprocal %34 {approx = true} : vector<4x8x1xf32> -> vector<4x8x1xf32>
      %36 = vector.broadcast %35 : vector<4x8x1xf32> to vector<4x8x8xf32>
      %37 = arith.mulf %33, %36 : vector<4x8x8xf32>
      %38 = arith.truncf %37 : vector<4x8x8xf32> to vector<4x8x8xbf16>
      %cst_38 = arith.constant 0.000000e+00 : f32
      %39 = vector.broadcast %cst_38 : f32 to vector<8x32xf32>
      %40 = vector.extract_strided_slice %38 {offsets = [0, 0, 0], sizes = [1, 8, 8], strides = [1, 1, 1]} : vector<4x8x8xbf16> to vector<1x8x8xbf16>
      %41 = vector.shape_cast %40 : vector<1x8x8xbf16> to vector<8x8xbf16>
      %c0_39 = arith.constant 0 : index
      %c0_40 = arith.constant 0 : index
      %c0_41 = arith.constant 0 : index
      %42 = vector.load %arg5[%c0_39, %c0_40, %c0_41] : memref<4x8x32xbf16, #tpu.memory_space<vmem>>, vector<1x8x32xbf16>
      %43 = vector.shape_cast %42 : vector<1x8x32xbf16> to vector<8x32xbf16>
      %cst_42 = arith.constant dense<0.000000e+00> : vector<8x32xf32>
      %44 = tpu.matmul %41, %43, %cst_42 {dimension_numbers = #tpu.dot_dimension_numbers<[1], [0], [0], [1], [0, 0, 1, 1], [], []>} : vector<8x8xbf16>, vector<8x32xbf16>, vector<8x32xf32> -> vector<8x32xf32>
      %45 = arith.addf %39, %44 : vector<8x32xf32>
      %46 = vector.extract_strided_slice %38 {offsets = [1, 0, 0], sizes = [1, 8, 8], strides = [1, 1, 1]} : vector<4x8x8xbf16> to vector<1x8x8xbf16>
      %47 = vector.shape_cast %46 : vector<1x8x8xbf16> to vector<8x8xbf16>
      %c1 = arith.constant 1 : index
      %c0_43 = arith.constant 0 : index
      %c0_44 = arith.constant 0 : index
      %48 = vector.load %arg5[%c1, %c0_43, %c0_44] : memref<4x8x32xbf16, #tpu.memory_space<vmem>>, vector<1x8x32xbf16>
      %49 = vector.shape_cast %48 : vector<1x8x32xbf16> to vector<8x32xbf16>
      %cst_45 = arith.constant dense<0.000000e+00> : vector<8x32xf32>
      %50 = tpu.matmul %47, %49, %cst_45 {dimension_numbers = #tpu.dot_dimension_numbers<[1], [0], [0], [1], [0, 0, 1, 1], [], []>} : vector<8x8xbf16>, vector<8x32xbf16>, vector<8x32xf32> -> vector<8x32xf32>
      %51 = arith.addf %45, %50 : vector<8x32xf32>
      %52 = vector.extract_strided_slice %38 {offsets = [2, 0, 0], sizes = [1, 8, 8], strides = [1, 1, 1]} : vector<4x8x8xbf16> to vector<1x8x8xbf16>
      %53 = vector.shape_cast %52 : vector<1x8x8xbf16> to vector<8x8xbf16>
      %c2 = arith.constant 2 : index
      %c0_46 = arith.constant 0 : index
      %c0_47 = arith.constant 0 : index
      %54 = vector.load %arg5[%c2, %c0_46, %c0_47] : memref<4x8x32xbf16, #tpu.memory_space<vmem>>, vector<1x8x32xbf16>
      %55 = vector.shape_cast %54 : vector<1x8x32xbf16> to vector<8x32xbf16>
      %cst_48 = arith.constant dense<0.000000e+00> : vector<8x32xf32>
      %56 = tpu.matmul %53, %55, %cst_48 {dimension_numbers = #tpu.dot_dimension_numbers<[1], [0], [0], [1], [0, 0, 1, 1], [], []>} : vector<8x8xbf16>, vector<8x32xbf16>, vector<8x32xf32> -> vector<8x32xf32>
      %57 = arith.addf %51, %56 : vector<8x32xf32>
      %58 = vector.extract_strided_slice %38 {offsets = [3, 0, 0], sizes = [1, 8, 8], strides = [1, 1, 1]} : vector<4x8x8xbf16> to vector<1x8x8xbf16>
      %59 = vector.shape_cast %58 : vector<1x8x8xbf16> to vector<8x8xbf16>
      %c3 = arith.constant 3 : index
      %c0_49 = arith.constant 0 : index
      %c0_50 = arith.constant 0 : index
      %60 = vector.load %arg5[%c3, %c0_49, %c0_50] : memref<4x8x32xbf16, #tpu.memory_space<vmem>>, vector<1x8x32xbf16>
      %61 = vector.shape_cast %60 : vector<1x8x32xbf16> to vector<8x32xbf16>
      %cst_51 = arith.constant dense<0.000000e+00> : vector<8x32xf32>
      %62 = tpu.matmul %59, %61, %cst_51 {dimension_numbers = #tpu.dot_dimension_numbers<[1], [0], [0], [1], [0, 0, 1, 1], [], []>} : vector<8x8xbf16>, vector<8x32xbf16>, vector<8x32xf32> -> vector<8x32xf32>
      %63 = arith.addf %57, %62 : vector<8x32xf32>
      %c0_52 = arith.constant 0 : index
      %c0_53 = arith.constant 0 : index
      %64 = vector.load %arg6[%c0_52, %c0_53] : memref<1x32xf32, #tpu.memory_space<vmem>>, vector<1x32xf32>
      %65 = vector.broadcast %64 : vector<1x32xf32> to vector<8x32xf32>
      %66 = arith.addf %63, %65 : vector<8x32xf32>
      %c0_54 = arith.constant 0 : index
      %c0_55 = arith.constant 0 : index
      %67 = vector.load %arg7[%c0_54, %c0_55] : memref<8x32xf32, #tpu.memory_space<vmem>>, vector<8x32xf32>
      tpu.vector_store %arg7[%c0_54, %c0_55], %66 {strides = array<i32>} : memref<8x32xf32, #tpu.memory_space<vmem>>, vector<8x32xf32>,
    } else {
    }
    return
  }
  func.func @transform_0(%arg0: i32, %arg1: i32) -> (i32, i32, i32) {
    %c0_i32 = arith.constant 0 : i32
    %c0_i32_0 = arith.constant 0 : i32
    %c0_i32_1 = arith.constant 0 : i32
    return %c0_i32, %arg0, %c0_i32_0 : i32, i32, i32
  }
  func.func @transform_1(%arg0: i32, %arg1: i32) -> (i32, i32, i32) {
    %c0_i32 = arith.constant 0 : i32
    %c0_i32_0 = arith.constant 0 : i32
    %c0_i32_1 = arith.constant 0 : i32
    return %c0_i32, %arg1, %c0_i32_0 : i32, i32, i32
  }
  func.func @transform_2(%arg0: i32, %arg1: i32) -> (i32, i32, i32) {
    %c0_i32 = arith.constant 0 : i32
    %c0_i32_0 = arith.constant 0 : i32
    %c0_i32_1 = arith.constant 0 : i32
    return %c0_i32, %arg1, %c0_i32_0 : i32, i32, i32
  }
  func.func @transform_3(%arg0: i32, %arg1: i32) -> (i32, i32, i32) {
    %c0_i32 = arith.constant 0 : i32
    %c0_i32_0 = arith.constant 0 : i32
    %c0_i32_1 = arith.constant 0 : i32
    %c0_i32_2 = arith.constant 0 : i32
    return %c0_i32, %c0_i32_0, %c0_i32_1 : i32, i32, i32
  }
  func.func @transform_4(%arg0: i32, %arg1: i32) -> (i32, i32) {
    %c0_i32 = arith.constant 0 : i32
    %c0_i32_0 = arith.constant 0 : i32
    %c0_i32_1 = arith.constant 0 : i32
    return %c0_i32, %c0_i32_0 : i32, i32
  }
  func.func @transform_5(%arg0: i32, %arg1: i32) -> (i32, i32) {
    %c0_i32 = arith.constant 0 : i32
    %c0_i32_0 = arith.constant 0 : i32
    return %arg0, %c0_i32 : i32, i32
  }
}

</mosaic_0001>

<llo_original>
// kernel: tpu_custom_call.1
$region0: #{tpu_custom_call.1}
  #allocation0 [shape = 'u32[]', space=smem, size = 0x4, offset = 0x4, fixed_abs, tag = 'smem constant byte address 0x4 - core index']
  #allocation1 [shape = 'u32[72,128]{1,0:T(1,128)}', space=vmem, size = 0x9000, scoped, tag = 'internal scratch']
  #allocation2 [shape = 'f32[4,8,1]{2,1,0:T(8,128)}', space=vmem, size = 0x4000, scoped, tag = 'scratch operand']
  #allocation3 [shape = 'f32[4,8,1]{2,1,0:T(8,128)}', space=vmem, size = 0x4000, scoped, tag = 'scratch operand']
  #allocation4 [shape = 'f32[4,8,8]{2,1,0:T(8,128)}', space=vmem, size = 0x4000, scoped, tag = 'scratch operand']
  %s0 = inlined_call_operand.vmem [shape: bf16[4,16,8], index: 0, kind: input, shape index: {}]
  %s1 = inlined_call_operand.vmem [shape: bf16[4,16,8], index: 1, kind: input, shape index: {}]
  %s2 = inlined_call_operand.vmem [shape: bf16[4,16,8], index: 2, kind: input, shape index: {}]
  %s3 = inlined_call_operand.vmem [shape: bf16[4,8,32], index: 3, kind: input, shape index: {}]
  %s4 = inlined_call_operand.vmem [shape: f32[1,32], index: 4, kind: input, shape index: {}]
  %s5 = inlined_call_operand.hbm [shape: f32[16,32], index: 5, kind: output, shape index: {}]
  %s6 = sld [smem:[#allocation0]]
  $region102: #{tpu_custom_call.1} parent=0
    _
  %s8 = ssub.s32 1, %s6
  %s9 = scalar_select 0, %s8, %s6
  $region1: #{tpu_custom_call.1} parent=0
    #allocation5 [shape = 'u8[16384]{0}', space=vmem, size = 0x4000, scoped, tag = 'input window, operand 0']
    #allocation6 [shape = 'u8[8192]{0}', space=vmem, size = 0x2000, scoped, tag = 'output window, operand 0']
    #allocation7 [shape = 's32[2]{0}', space=sflag, size = 0x8, scoped, tag = 'scoped memory for tpu_custom_call.1']
    %10 = vsyncpa [#allocation7], 0
    %s11 = scalar_lea.sflag [#allocation7], 1
    %12 = vsyncpa %s11, 0
    loop: start=0, step=1, limit=4
    $region2: #{tpu_custom_call.1} parent=1 // loop_pre_header
      _
    $region3: #{tpu_custom_call.1} parent=1 // loop_header
      %s14 = sphi 0, %s18
      %p15 = scmp.ge.s32.totalorder %s14, 4
      %s21 = sphi 0, %s33
      %s22 = sphi 0, %s29
      %s23 = sphi 0, %s21
      %s24 = sphi 0, %s22
      %s25 = sphi 0, %s23
      %s26 = sphi 0, %s24
      %s36 = sphi 0, %s38
      %s39 = sphi 0, %s36
      %s40 = sphi 0, %s39
      %s56 = sphi 0, %s40
      %s62 = sphi 0, %s64
      %s65 = sphi 0, %s62
      %s66 = sphi 0, %s65
      %s82 = sphi 0, %s66
      %s88 = sphi 0, %s90
      %s91 = sphi 0, %s88
      %s92 = sphi 0, %s91
      %s108 = sphi 0, %s92
      %s112 = sphi 0, %s112
      %s114 = sphi 0, %s112
      %s115 = sphi 0, %s114
      %s129 = sphi 0, %s115
      %s133 = sphi 0, %s133
      %s135 = sphi 0, %s133
      %s136 = sphi 0, %s135
      %s150 = sphi 0, %s136
      %s156 = sphi 0, %s158
      %s159 = sphi 0, %s156
      %s160 = sphi 0, %s159
      %s176 = sphi 0, %s160
    $region4: #{tpu_custom_call.1} parent=1 // loop_header_branch
      %17 = sbr.rel (%p15) target = $region8
    $region5: #{tpu_custom_call.1} parent=1 // loop_body
      %s19 = ssub.s32 %s14, 1
      %s20 = ssub.s32 %s14, 2
      %s27 = sadd.s32 1, %s22
      %p28 = scmp.ge.s32.totalorder %s27, 1
      %s29 = scalar_select %p28, 0, %s27
      %s30 = sadd.s32 1, %s21
      %s31 = scalar_select %p28, %s30, %s21
      %p32 = scmp.ge.s32.totalorder %s31, 2
      %s33 = scalar_select %p32, 0, %s31
      %s34 = ssub.s32 %s21, %s33
      %p35 = scmp.eq.s32.totalorder %s34, 0
      %s37 = sadd.s32 %s36, 1
      %s38 = scalar_select %p35, %s36, %s37
      %p41 = pneg %p35
      %p42 = scmp.eq.s32.totalorder %s14, 1
      %p43 = por %p41, %p42
      %p44 = scmp.ne.s32.totalorder %s36, %s39
      %p45 = scmp.eq.s32.totalorder %s14, 0
      %p46 = por %p44, %p45
      %p47 = scmp.ne.s32.totalorder %s36, %s39
      %p48 = scmp.eq.s32.totalorder %s19, 1
      %p49 = por %p47, %p48
      %p50 = scmp.ne.s32.totalorder %s39, %s40
      %p51 = scmp.eq.s32.totalorder %s19, 0
      %p52 = por %p50, %p51
      %p53 = scmp.ne.s32.totalorder %s39, %s40
      %p54 = scmp.eq.s32.totalorder %s20, 1
      %p55 = por %p53, %p54
      %p57 = scmp.ne.s32.totalorder %s40, %s56
      %p58 = scmp.eq.s32.totalorder %s20, 0
      %p59 = por %p57, %p58
      %s60 = ssub.s32 %s22, %s29
      %p61 = scmp.eq.s32.totalorder %s60, 0
      %s63 = sadd.s32 %s62, 1
      %s64 = scalar_select %p61, %s62, %s63
      %p67 = pneg %p61
      %p68 = scmp.eq.s32.totalorder %s14, 1
      %p69 = por %p67, %p68
      %p70 = scmp.ne.s32.totalorder %s62, %s65
      %p71 = scmp.eq.s32.totalorder %s14, 0
      %p72 = por %p70, %p71
      %p73 = scmp.ne.s32.totalorder %s62, %s65
      %p74 = scmp.eq.s32.totalorder %s19, 1
      %p75 = por %p73, %p74
      %p76 = scmp.ne.s32.totalorder %s65, %s66
      %p77 = scmp.eq.s32.totalorder %s19, 0
      %p78 = por %p76, %p77
      %p79 = scmp.ne.s32.totalorder %s65, %s66
      %p80 = scmp.eq.s32.totalorder %s20, 1
      %p81 = por %p79, %p80
      %p83 = scmp.ne.s32.totalorder %s66, %s82
      %p84 = scmp.eq.s32.totalorder %s20, 0
      %p85 = por %p83, %p84
      %s86 = ssub.s32 %s22, %s29
      %p87 = scmp.eq.s32.totalorder %s86, 0
      %s89 = sadd.s32 %s88, 1
      %s90 = scalar_select %p87, %s88, %s89
      %p93 = pneg %p87
      %p94 = scmp.eq.s32.totalorder %s14, 1
      %p95 = por %p93, %p94
      %p96 = scmp.ne.s32.totalorder %s88, %s91
      %p97 = scmp.eq.s32.totalorder %s14, 0
      %p98 = por %p96, %p97
      %p99 = scmp.ne.s32.totalorder %s88, %s91
      %p100 = scmp.eq.s32.totalorder %s19, 1
      %p101 = por %p99, %p100
      %p102 = scmp.ne.s32.totalorder %s91, %s92
      %p103 = scmp.eq.s32.totalorder %s19, 0
      %p104 = por %p102, %p103
      %p105 = scmp.ne.s32.totalorder %s91, %s92
      %p106 = scmp.eq.s32.totalorder %s20, 1
      %p107 = por %p105, %p106
      %p109 = scmp.ne.s32.totalorder %s92, %s108
      %p110 = scmp.eq.s32.totalorder %s20, 0
      %p111 = por %p109, %p110
      %s113 = sadd.s32 %s112, 1
      %p116 = scmp.eq.s32.totalorder %s14, 1
      %p117 = scmp.ne.s32.totalorder %s112, %s114
      %p118 = scmp.eq.s32.totalorder %s14, 0
      %p119 = por %p117, %p118
      %p120 = scmp.ne.s32.totalorder %s112, %s114
      %p121 = scmp.eq.s32.totalorder %s19, 1
      %p122 = por %p120, %p121
      %p123 = scmp.ne.s32.totalorder %s114, %s115
      %p124 = scmp.eq.s32.totalorder %s19, 0
      %p125 = por %p123, %p124
      %p126 = scmp.ne.s32.totalorder %s114, %s115
      %p127 = scmp.eq.s32.totalorder %s20, 1
      %p128 = por %p126, %p127
      %p130 = scmp.ne.s32.totalorder %s115, %s129
      %p131 = scmp.eq.s32.totalorder %s20, 0
      %p132 = por %p130, %p131
      %s134 = sadd.s32 %s133, 1
      %p137 = scmp.eq.s32.totalorder %s14, 1
      %p138 = scmp.ne.s32.totalorder %s133, %s135
      %p139 = scmp.eq.s32.totalorder %s14, 0
      %p140 = por %p138, %p139
      %p141 = scmp.ne.s32.totalorder %s133, %s135
      %p142 = scmp.eq.s32.totalorder %s19, 1
      %p143 = por %p141, %p142
      %p144 = scmp.ne.s32.totalorder %s135, %s136
      %p145 = scmp.eq.s32.totalorder %s19, 0
      %p146 = por %p144, %p145
      %p147 = scmp.ne.s32.totalorder %s135, %s136
      %p148 = scmp.eq.s32.totalorder %s20, 1
      %p149 = por %p147, %p148
      %p151 = scmp.ne.s32.totalorder %s136, %s150
      %p152 = scmp.eq.s32.totalorder %s20, 0
      %p153 = por %p151, %p152
      %s154 = ssub.s32 %s21, %s33
      %p155 = scmp.eq.s32.totalorder %s154, 0
      %s157 = sadd.s32 %s156, 1
      %s158 = scalar_select %p155, %s156, %s157
      %p161 = pneg %p155
      %p162 = scmp.eq.s32.totalorder %s14, 1
      %p163 = por %p161, %p162
      %p164 = scmp.ne.s32.totalorder %s156, %s159
      %p165 = scmp.eq.s32.totalorder %s14, 0
      %p166 = por %p164, %p165
      %p167 = scmp.ne.s32.totalorder %s156, %s159
      %p168 = scmp.eq.s32.totalorder %s19, 1
      %p169 = por %p167, %p168
      %p170 = scmp.ne.s32.totalorder %s159, %s160
      %p171 = scmp.eq.s32.totalorder %s19, 0
      %p172 = por %p170, %p171
      %p173 = scmp.ne.s32.totalorder %s159, %s160
      %p174 = scmp.eq.s32.totalorder %s20, 1
      %p175 = por %p173, %p174
      %p177 = scmp.ne.s32.totalorder %s160, %s176
      %p178 = scmp.eq.s32.totalorder %s20, 0
      %p179 = por %p177, %p178
      %p180 = scmp.le.s32.totalorder 1, %s14
      %p181 = scmp.lt.s32.totalorder %s14, 3
      %p182 = pnand %p180, %p181
      %p183 = pneg %p182
      // Predicated region
      $region9: #{tpu_custom_call.1} parent=5 // pred_check
        _
      $region10: #{tpu_custom_call.1} parent=5 // pred_check_branch
        %185 = sbr.rel (%p182) target = $region12
      $region11: #{tpu_custom_call.1} parent=5 // pred_region
        %s186 = ssub.s32 %s14, 1
        // Predicated region
        $region13: #{tpu_custom_call.1} parent=11 // pred_check
          %p187 = pneg %p78
        $region14: #{tpu_custom_call.1} parent=11 // pred_check_branch
          %189 = sbr.rel (%p187) target = $region16
        $region15: #{tpu_custom_call.1} parent=11 // pred_region
          %s190 = smul.u32 2, %s24
          %p191 = scmp.lt.s32.totalorder %s190, 1
          %s192 = scalar_select %p191, %s190, 1
          %s193 = smul.addr %s192, 4
          %s194 = scalar_lea.vmem %s1, %s193
          %s195 = smul.u32 2, %s24
        $region16: #{tpu_custom_call.1} parent=11 // pred_fallthru
          _
        // Predicated region
        $region17: #{tpu_custom_call.1} parent=11 // pred_check
          %p196 = pneg %p104
        $region18: #{tpu_custom_call.1} parent=11 // pred_check_branch
          %198 = sbr.rel (%p196) target = $region20
        $region19: #{tpu_custom_call.1} parent=11 // pred_region
          %s199 = smul.u32 2, %s24
          %p200 = scmp.lt.s32.totalorder %s199, 1
          %s201 = scalar_select %p200, %s199, 1
          %s202 = smul.addr %s201, 4
          %s203 = scalar_lea.vmem %s2, %s202
          %s204 = smul.u32 2, %s24
        $region20: #{tpu_custom_call.1} parent=11 // pred_fallthru
          _
        // Predicated region
        $region21: #{tpu_custom_call.1} parent=11 // pred_check
          %p205 = pneg %p125
        $region22: #{tpu_custom_call.1} parent=11 // pred_check_branch
          %207 = sbr.rel (%p205) target = $region24
        $region23: #{tpu_custom_call.1} parent=11 // pred_region
          _
        $region24: #{tpu_custom_call.1} parent=11 // pred_fallthru
          _
        // Predicated region
        $region25: #{tpu_custom_call.1} parent=11 // pred_check
          %p208 = pneg %p146
        $region26: #{tpu_custom_call.1} parent=11 // pred_check_branch
          %210 = sbr.rel (%p208) target = $region28
        $region27: #{tpu_custom_call.1} parent=11 // pred_region
          _
        $region28: #{tpu_custom_call.1} parent=11 // pred_fallthru
          _
      $region12: #{tpu_custom_call.1} parent=5 // pred_fallthru
        _
      %p211 = scmp.lt.s32.totalorder %s14, 2
      // Predicated region
      $region29: #{tpu_custom_call.1} parent=5 // pred_check
        %p212 = pneg %p211
      $region30: #{tpu_custom_call.1} parent=5 // pred_check_branch
        %214 = sbr.rel (%p212) target = $region32
      $region31: #{tpu_custom_call.1} parent=5 // pred_region
        // Predicated region
        $region33: #{tpu_custom_call.1} parent=31 // pred_check
          %p215 = pneg %p46
        $region34: #{tpu_custom_call.1} parent=31 // pred_check_branch
          %217 = sbr.rel (%p215) target = $region36
        $region35: #{tpu_custom_call.1} parent=31 // pred_region
          %s218 = sand.u32 %s36, 1
          %s219 = sand.u32 %s36, 1
          %s220 = smul.addr %s219, 16
          %s221 = scalar_lea.vmem [#allocation5], %s220
          %s222 = smul.addr %s21, 4
          %s223 = scalar_lea.vmem %s0, %s222
          // Predicated region
          $region37: #{tpu_custom_call.1} parent=35 // pred_check
            _
          $region38: #{tpu_custom_call.1} parent=35 // pred_check_branch
            %225 = sbr.rel (0) target = $region40
          $region39: #{tpu_custom_call.1} parent=35 // pred_region
            // Predicated region
            $region41: #{tpu_custom_call.1} parent=39 // pred_check
              _
            $region42: #{tpu_custom_call.1} parent=39 // pred_check_branch
              %227 = sbr.rel target = $region44
            $region43: #{tpu_custom_call.1} parent=39 // pred_region
              // Predicated region
              $region56: #{tpu_custom_call.1} parent=43 // pred_check
                _
              $region57: #{tpu_custom_call.1} parent=43 // pred_check_branch
                %249 = sbr.rel (0) target = $region59
              $region58: #{tpu_custom_call.1} parent=43 // pred_region
                loop: start=0, step=1, limit=1
                $region60: #{tpu_custom_call.1} parent=58 // loop_pre_header
                  _
                $region61: #{tpu_custom_call.1} parent=58 // loop_header
                  %s251 = sphi 0, %s255
                  %p252 = scmp.ge.s32.totalorder %s251, 1
                  %s256 = sphi %s223, %s223
                  %s257 = sphi %s221, %s221
                $region62: #{tpu_custom_call.1} parent=58 // loop_header_branch
                  %254 = sbr.rel (%p252) target = $region66
                $region63: #{tpu_custom_call.1} parent=58 // loop_body
                  _
                $region64: #{tpu_custom_call.1} parent=58 // loop_footer
                  %s255 = sadd.s32 1, %s251
                $region65: #{tpu_custom_call.1} parent=58 // loop_footer_branch
                  %250 = sbr.rel target = $region61
                $region66: #{tpu_custom_call.1} parent=58 // loop_exit
                  _
                %s259 = ssub.s32 16, 1
                loop: start=0, step=1, limit=1
                $region67: #{tpu_custom_call.1} parent=58 // loop_pre_header
                  _
                $region68: #{tpu_custom_call.1} parent=58 // loop_header
                  %s261 = sphi 0, %s265
                  %p262 = scmp.ge.s32.totalorder %s261, 1
                  %s266 = sphi %s223, %s223
                  %s267 = sphi %s221, %s221
                $region69: #{tpu_custom_call.1} parent=58 // loop_header_branch
                  %264 = sbr.rel (%p262) target = $region73
                $region70: #{tpu_custom_call.1} parent=58 // loop_body
                  %v268 = vld [vmem:[%s266] sm:%s259]
                  %269 = vst [vmem:[%s267] sm:%s259] %v268
                  %v270 = vld [vmem:[%s266 + $0x8] sm:%s259]
                  %271 = vst [vmem:[%s267 + $0x4] sm:%s259] %v270
                  %v272 = vld [vmem:[%s266 + $0x10] sm:%s259]
                  %273 = vst [vmem:[%s267 + $0x8] sm:%s259] %v272
                  %v274 = vld [vmem:[%s266 + $0x18] sm:%s259]
                  %275 = vst [vmem:[%s267 + $0xc] sm:%s259] %v274
                $region71: #{tpu_custom_call.1} parent=58 // loop_footer
                  %s265 = sadd.s32 1, %s261
                $region72: #{tpu_custom_call.1} parent=58 // loop_footer_branch
                  %260 = sbr.rel target = $region68
                $region73: #{tpu_custom_call.1} parent=58 // loop_exit
                  _
              $region59: #{tpu_custom_call.1} parent=43 // pred_fallthru
                _
            $region44: #{tpu_custom_call.1} parent=39 // pred_fallthru
              _
            // Predicated region
            $region45: #{tpu_custom_call.1} parent=39 // pred_check
              _
            $region46: #{tpu_custom_call.1} parent=39 // pred_check_branch
              %229 = sbr.rel (0) target = $region48
            $region47: #{tpu_custom_call.1} parent=39 // pred_region
              %s231 = ssub.s32 16, 1
              loop: start=0, step=1, limit=1
              $region49: #{tpu_custom_call.1} parent=47 // loop_pre_header
                _
              $region50: #{tpu_custom_call.1} parent=47 // loop_header
                %s233 = sphi 0, %s237
                %p234 = scmp.ge.s32.totalorder %s233, 1
                %s238 = sphi %s223, %s223
                %s239 = sphi %s221, %s221
              $region51: #{tpu_custom_call.1} parent=47 // loop_header_branch
                %236 = sbr.rel (%p234) target = $region55
              $region52: #{tpu_custom_call.1} parent=47 // loop_body
                %v240 = vld [vmem:[%s238] sm:%s231]
                %241 = vst [vmem:[%s239] sm:%s231] %v240
                %v242 = vld [vmem:[%s238 + $0x8] sm:%s231]
                %243 = vst [vmem:[%s239 + $0x4] sm:%s231] %v242
                %v244 = vld [vmem:[%s238 + $0x10] sm:%s231]
                %245 = vst [vmem:[%s239 + $0x8] sm:%s231] %v244
                %v246 = vld [vmem:[%s238 + $0x18] sm:%s231]
                %247 = vst [vmem:[%s239 + $0xc] sm:%s231] %v246
              $region53: #{tpu_custom_call.1} parent=47 // loop_footer
                %s237 = sadd.s32 1, %s233
              $region54: #{tpu_custom_call.1} parent=47 // loop_footer_branch
                %232 = sbr.rel target = $region50
              $region55: #{tpu_custom_call.1} parent=47 // loop_exit
                _
            $region48: #{tpu_custom_call.1} parent=39 // pred_fallthru
              _
          $region40: #{tpu_custom_call.1} parent=35 // pred_fallthru
            _
          %276 = vnop
        $region36: #{tpu_custom_call.1} parent=31 // pred_fallthru
          _
      $region32: #{tpu_custom_call.1} parent=5 // pred_fallthru
        _
      %p277 = scmp.le.s32.totalorder 1, %s14
      %p278 = scmp.lt.s32.totalorder %s14, 3
      %p279 = pnand %p277, %p278
      %p280 = pneg %p279
      // Predicated region
      $region74: #{tpu_custom_call.1} parent=5 // pred_check
        _
      $region75: #{tpu_custom_call.1} parent=5 // pred_check_branch
        %282 = sbr.rel (%p279) target = $region77
      $region76: #{tpu_custom_call.1} parent=5 // pred_region
        %s283 = ssub.s32 %s14, 1
        %s284 = sand.u32 %s39, 1
        %s285 = sand.u32 %s39, 1
        %s286 = smul.addr %s285, 16
        %s287 = scalar_lea.vmem [#allocation5], %s286
        // Predicated region
        $region78: #{tpu_custom_call.1} parent=76 // pred_check
          %p288 = pneg %p52
        $region79: #{tpu_custom_call.1} parent=76 // pred_check_branch
          %290 = sbr.rel (%p288) target = $region81
        $region80: #{tpu_custom_call.1} parent=76 // pred_region
          _
        $region81: #{tpu_custom_call.1} parent=76 // pred_fallthru
          _
        %s291 = sand.u32 %s39, 1
        %s292 = sand.u32 %s39, 1
        %s293 = smul.addr %s292, 16
        %s294 = scalar_lea.vmem [#allocation5], %s293
        %p295 = pneg %p52
        %p296 = pneg %p49
        %s297 = smul.u32 2, %s24
        %p298 = scmp.lt.s32.totalorder %s297, 1
        %s299 = scalar_select %p298, %s297, 1
        %s300 = smul.addr %s299, 4
        %s301 = scalar_lea.vmem %s1, %s300
        %p302 = pneg %p78
        %p303 = pneg %p75
        %s304 = smul.u32 2, %s24
        %p305 = scmp.lt.s32.totalorder %s304, 1
        %s306 = scalar_select %p305, %s304, 1
        %s307 = smul.addr %s306, 4
        %s308 = scalar_lea.vmem %s2, %s307
        %p309 = pneg %p104
        %p310 = pneg %p101
        %p311 = pneg %p125
        %p312 = pneg %p122
        %p313 = pneg %p146
        %p314 = pneg %p143
        %p315 = pneg %p172
        %p316 = pneg %p169
        %s317 = sand.u32 %s159, 1
        %s318 = scalar_lea.sflag [#allocation7], %s317
        %s319 = sand.u32 %s159, 1
        %s320 = smul.addr %s319, 8
        %s321 = scalar_lea.vmem [#allocation6], %s320
        %s322 = smul.u32 2, %s24
        %p323 = scmp.lt.s32.totalorder %s322, 1
        %s324 = scalar_select %p323, %s322, 1
        %s325 = smul.addr %s324, 4
        %s326 = scalar_lea.vmem %s1, %s325
        %s327 = smul.u32 2, %s24
        %s328 = smul.u32 2, %s24
        %p329 = scmp.lt.s32.totalorder %s328, 1
        %s330 = scalar_select %p329, %s328, 1
        %s331 = smul.addr %s330, 4
        %s332 = scalar_lea.vmem %s2, %s331
        %s333 = smul.u32 2, %s24
        %p335 = scmp.eq.s32.totalorder %s24, 0
        // Predicated region
        $region82: #{tpu_custom_call.1} parent=76 // pred_check
          %p336 = pneg %p335
        $region83: #{tpu_custom_call.1} parent=76 // pred_check_branch
          %338 = sbr.rel (%p336) target = $region85
        $region84: #{tpu_custom_call.1} parent=76 // pred_region
          %vm339 = vcmask 7168
          %340 = vst.msk [vmem:[#allocation2] sm:$0xff] %vm339, -inf
          %341 = vst.msk [vmem:[#allocation2 + $0x8] sm:$0xff] %vm339, -inf
          %342 = vst.msk [vmem:[#allocation2 + $0x10] sm:$0xff] %vm339, -inf
          %343 = vst.msk [vmem:[#allocation2 + $0x18] sm:$0xff] %vm339, -inf
          %344 = vst.msk [vmem:[#allocation3] sm:$0xff] %vm339, 0.0
          %345 = vst.msk [vmem:[#allocation3 + $0x8] sm:$0xff] %vm339, 0.0
          %346 = vst.msk [vmem:[#allocation3 + $0x10] sm:$0xff] %vm339, 0.0
          %347 = vst.msk [vmem:[#allocation3 + $0x18] sm:$0xff] %vm339, 0.0
          %vm348 = vcmask 64512
          %349 = vst.msk [vmem:[#allocation4] sm:$0xff] %vm348, 0.0
          %350 = vst.msk [vmem:[#allocation4 + $0x8] sm:$0xff] %vm348, 0.0
          %351 = vst.msk [vmem:[#allocation4 + $0x10] sm:$0xff] %vm348, 0.0
          %352 = vst.msk [vmem:[#allocation4 + $0x18] sm:$0xff] %vm348, 0.0
        $region85: #{tpu_custom_call.1} parent=76 // pred_fallthru
          _
        %v353 = vld [vmem:[%s287] sm:$0xf]
        %v354 = vld [vmem:[%s287 + $0x4] sm:$0xf]
        %v355 = vld [vmem:[%s287 + $0x8] sm:$0xf]
        %v356 = vld [vmem:[%s287 + $0xc] sm:$0xf]
        %v357 = vld [vmem:[%s326] sm:$0xf]
        %v358 = vld [vmem:[%s326 + $0x4] sm:$0xf]
        %v359 = vld [vmem:[%s326 + $0x8] sm:$0xf]
        %v360 = vld [vmem:[%s326 + $0xc] sm:$0xf]
        %v361 = vld [vmem:[%s326 + $0x10] sm:$0xf]
        %v362 = vld [vmem:[%s326 + $0x14] sm:$0xf]
        %v363 = vld [vmem:[%s326 + $0x18] sm:$0xf]
        %v364 = vld [vmem:[%s326 + $0x1c] sm:$0xf]
        %v365 = vld [vmem:[%s332] sm:$0xf]
        %v366 = vld [vmem:[%s332 + $0x4] sm:$0xf]
        %v367 = vld [vmem:[%s332 + $0x8] sm:$0xf]
        %v368 = vld [vmem:[%s332 + $0xc] sm:$0xf]
        %v369 = vld [vmem:[%s332 + $0x10] sm:$0xf]
        %v370 = vld [vmem:[%s332 + $0x14] sm:$0xf]
        %v371 = vld [vmem:[%s332 + $0x18] sm:$0xf]
        %v372 = vld [vmem:[%s332 + $0x1c] sm:$0xf]
        %v375 = vunpack.c.l.b16 %v357
        %v376 = vunpack.c.l.b16 %v358
        %v377 = vpack.c.b16 %v376, %v375
        %vm378 = vcmask 64512
        %v380 = vsel %vm378, %v353, 0
        %v383 = vsel %vm378, %v377, 0
        %385 = vmatpush.bf16.xpose.msra.mxu0 0
        %386 = vmatpush.bf16.xpose.msra.mxu0 0
        %387 = vmatpush.bf16.xpose.msra.mxu0 0
        %388 = vmatpush.bf16.xpose.msra.mxu0 0
        %389 = vmatpush.bf16.xpose.msra.mxu0 0
        %390 = vmatpush.bf16.xpose.msra.mxu0 0
        %391 = vmatpush.bf16.xpose.msra.mxu0 0
        %392 = vmatpush.bf16.xpose.msra.mxu0 %v383
        %393 = vmatmul.bf16.gmra.mxu0 %v380
        %v394 = vpop.f32.mrf.mxu0
        %v395 = vadd.f32 0.0, %v394
        %v396 = vpop.f32.mrf.mxu0
        %397 = vdwg.mxu0
        %v400 = vunpack.c.l.b16 %v359
        %v401 = vunpack.c.l.b16 %v360
        %v402 = vpack.c.b16 %v401, %v400
        %v404 = vsel %vm378, %v354, 0
        %v407 = vsel %vm378, %v402, 0
        %409 = vmatpush.bf16.xpose.msra.mxu0 0
        %410 = vmatpush.bf16.xpose.msra.mxu0 0
        %411 = vmatpush.bf16.xpose.msra.mxu0 0
        %412 = vmatpush.bf16.xpose.msra.mxu0 0
        %413 = vmatpush.bf16.xpose.msra.mxu0 0
        %414 = vmatpush.bf16.xpose.msra.mxu0 0
        %415 = vmatpush.bf16.xpose.msra.mxu0 0
        %416 = vmatpush.bf16.xpose.msra.mxu0 %v407
        %417 = vmatmul.bf16.gmra.mxu0 %v404
        %v418 = vpop.f32.mrf.mxu0
        %v419 = vadd.f32 0.0, %v418
        %v420 = vpop.f32.mrf.mxu0
        %421 = vdwg.mxu0
        %v424 = vunpack.c.l.b16 %v361
        %v425 = vunpack.c.l.b16 %v362
        %v426 = vpack.c.b16 %v425, %v424
        %v428 = vsel %vm378, %v355, 0
        %v431 = vsel %vm378, %v426, 0
        %433 = vmatpush.bf16.xpose.msra.mxu0 0
        %434 = vmatpush.bf16.xpose.msra.mxu0 0
        %435 = vmatpush.bf16.xpose.msra.mxu0 0
        %436 = vmatpush.bf16.xpose.msra.mxu0 0
        %437 = vmatpush.bf16.xpose.msra.mxu0 0
        %438 = vmatpush.bf16.xpose.msra.mxu0 0
        %439 = vmatpush.bf16.xpose.msra.mxu0 0
        %440 = vmatpush.bf16.xpose.msra.mxu0 %v431
        %441 = vmatmul.bf16.gmra.mxu0 %v428
        %v442 = vpop.f32.mrf.mxu0
        %v443 = vadd.f32 0.0, %v442
        %v444 = vpop.f32.mrf.mxu0
        %445 = vdwg.mxu0
        %v448 = vunpack.c.l.b16 %v363
        %v449 = vunpack.c.l.b16 %v364
        %v450 = vpack.c.b16 %v449, %v448
        %v452 = vsel %vm378, %v356, 0
        %v455 = vsel %vm378, %v450, 0
        %457 = vmatpush.bf16.xpose.msra.mxu0 0
        %458 = vmatpush.bf16.xpose.msra.mxu0 0
        %459 = vmatpush.bf16.xpose.msra.mxu0 0
        %460 = vmatpush.bf16.xpose.msra.mxu0 0
        %461 = vmatpush.bf16.xpose.msra.mxu0 0
        %462 = vmatpush.bf16.xpose.msra.mxu0 0
        %463 = vmatpush.bf16.xpose.msra.mxu0 0
        %464 = vmatpush.bf16.xpose.msra.mxu0 %v455
        %465 = vmatmul.bf16.gmra.mxu0 %v452
        %v466 = vpop.f32.mrf.mxu0
        %v467 = vadd.f32 0.0, %v466
        %v468 = vpop.f32.mrf.mxu0
        %469 = vdwg.mxu0
        %v470 = vld [vmem:[#allocation2] sm:$0xff]
        %v471 = vld [vmem:[#allocation2 + $0x8] sm:$0xff]
        %v472 = vld [vmem:[#allocation2 + $0x10] sm:$0xff]
        %v473 = vld [vmem:[#allocation2 + $0x18] sm:$0xff]
        %vm474 = vcmask 130048
        %v475 = vsel %vm474, %v395, -inf
        %476 = vmax.xlane.f32.xlu0 %v475
        %v477 = vpop.xlane.xlu0 %476
        %v478 = vsel %vm474, %v419, -inf
        %479 = vmax.xlane.f32.xlu0 %v478
        %v480 = vpop.xlane.xlu0 %479
        %v481 = vsel %vm474, %v443, -inf
        %482 = vmax.xlane.f32.xlu0 %v481
        %v483 = vpop.xlane.xlu0 %482
        %v484 = vsel %vm474, %v467, -inf
        %485 = vmax.xlane.f32.xlu0 %v484
        %v486 = vpop.xlane.xlu0 %485
        %v487 = vmax.f32 %v470, %v477
        %v488 = vmax.f32 %v471, %v480
        %v489 = vmax.f32 %v472, %v483
        %v490 = vmax.f32 %v473, %v486
        %v491 = vsub.f32 %v470, %v487
        %v492 = vsub.f32 %v471, %v488
        %v493 = vsub.f32 %v472, %v489
        %v494 = vsub.f32 %v473, %v490
        %v495 = vmul.f32 %v491, 1.442695
        %v496 = vpow.pop %v495
        %v497 = vmul.f32 %v492, 1.442695
        %v498 = vpow.pop %v497
        %v499 = vmul.f32 %v493, 1.442695
        %v500 = vpow.pop %v499
        %v501 = vmul.f32 %v494, 1.442695
        %v502 = vpow.pop %v501
        %504 = vset.pattern.permute.xlu0 0
        %505 = vperm.xlu0 %504, %v487
        %v506 = vpop.permute.xlu0 %505
        %509 = vset.pattern.permute.xlu0 0
        %510 = vperm.xlu0 %509, %v488
        %v511 = vpop.permute.xlu0 %510
        %514 = vset.pattern.permute.xlu0 0
        %515 = vperm.xlu0 %514, %v489
        %v516 = vpop.permute.xlu0 %515
        %519 = vset.pattern.permute.xlu0 0
        %520 = vperm.xlu0 %519, %v490
        %v521 = vpop.permute.xlu0 %520
        %v523 = vsub.f32 %v395, %v506
        %v524 = vsub.f32 %v419, %v511
        %v525 = vsub.f32 %v443, %v516
        %v526 = vsub.f32 %v467, %v521
        %v527 = vmul.f32 %v523, 1.442695
        %v528 = vpow.pop %v527
        %v529 = vmul.f32 %v524, 1.442695
        %v530 = vpow.pop %v529
        %v531 = vmul.f32 %v525, 1.442695
        %v532 = vpow.pop %v531
        %v533 = vmul.f32 %v526, 1.442695
        %v534 = vpow.pop %v533
        %v535 = vld [vmem:[#allocation3] sm:$0xff]
        %v536 = vld [vmem:[#allocation3 + $0x8] sm:$0xff]
        %v537 = vld [vmem:[#allocation3 + $0x10] sm:$0xff]
        %v538 = vld [vmem:[#allocation3 + $0x18] sm:$0xff]
        %v539 = vmul.f32 %v496, %v535
        %v540 = vmul.f32 %v498, %v536
        %v541 = vmul.f32 %v500, %v537
        %v542 = vmul.f32 %v502, %v538
        %v543 = vsel %vm474, %v528, 0.0
        %544 = vadd.xlane.f32.xlu0 %v543
        %v545 = vpop.xlane.xlu0 %544
        %v546 = vsel %vm474, %v530, 0.0
        %547 = vadd.xlane.f32.xlu0 %v546
        %v548 = vpop.xlane.xlu0 %547
        %v549 = vsel %vm474, %v532, 0.0
        %550 = vadd.xlane.f32.xlu0 %v549
        %v551 = vpop.xlane.xlu0 %550
        %v552 = vsel %vm474, %v534, 0.0
        %553 = vadd.xlane.f32.xlu0 %v552
        %v554 = vpop.xlane.xlu0 %553
        %v555 = vadd.f32 %v539, %v545
        %v556 = vadd.f32 %v540, %v548
        %v557 = vadd.f32 %v541, %v551
        %v558 = vadd.f32 %v542, %v554
        %vm559 = vcmask 7168
        %560 = vst.msk [vmem:[#allocation3] sm:$0xff] %vm559, %v555
        %561 = vst.msk [vmem:[#allocation3 + $0x8] sm:$0xff] %vm559, %v556
        %562 = vst.msk [vmem:[#allocation3 + $0x10] sm:$0xff] %vm559, %v557
        %563 = vst.msk [vmem:[#allocation3 + $0x18] sm:$0xff] %vm559, %v558
        %v564 = vld [vmem:[#allocation4] sm:$0xff]
        %v565 = vld [vmem:[#allocation4 + $0x8] sm:$0xff]
        %v566 = vld [vmem:[#allocation4 + $0x10] sm:$0xff]
        %v567 = vld [vmem:[#allocation4 + $0x18] sm:$0xff]
        %569 = vset.pattern.permute.xlu0 0
        %570 = vperm.xlu0 %569, %v496
        %v571 = vpop.permute.xlu0 %570
        %574 = vset.pattern.permute.xlu0 0
        %575 = vperm.xlu0 %574, %v498
        %v576 = vpop.permute.xlu0 %575
        %579 = vset.pattern.permute.xlu0 0
        %580 = vperm.xlu0 %579, %v500
        %v581 = vpop.permute.xlu0 %580
        %584 = vset.pattern.permute.xlu0 0
        %585 = vperm.xlu0 %584, %v502
        %v586 = vpop.permute.xlu0 %585
        %v588 = vmul.f32 %v571, %v564
        %v589 = vmul.f32 %v576, %v565
        %v590 = vmul.f32 %v581, %v566
        %v591 = vmul.f32 %v586, %v567
        %v592 = vpack.c.bf16 %v528, %v528
        %v593 = vpack.c.bf16 %v530, %v530
        %v594 = vpack.c.bf16 %v532, %v532
        %v595 = vpack.c.bf16 %v534, %v534
        %v598 = vunpack.c.l.b16 %v365
        %v599 = vunpack.c.l.b16 %v366
        %v600 = vpack.c.b16 %v599, %v598
        %v603 = vsel %vm474, %v592, 0
        %605 = vmatpush.bf16.msra.mxu0 0
        %606 = vmatpush.bf16.msra.mxu0 0
        %607 = vmatpush.bf16.msra.mxu0 0
        %608 = vmatpush.bf16.msra.mxu0 0
        %609 = vmatpush.bf16.msra.mxu0 0
        %610 = vmatpush.bf16.msra.mxu0 0
        %611 = vmatpush.bf16.msra.mxu0 0
        %612 = vmatpush.bf16.msra.mxu0 %v600
        %613 = vmatmul.bf16.gmra.mxu0 %v603
        %v614 = vpop.f32.mrf.mxu0
        %v615 = vadd.f32 0.0, %v614
        %v616 = vpop.f32.mrf.mxu0
        %617 = vdwg.mxu0
        %v620 = vunpack.c.l.b16 %v367
        %v621 = vunpack.c.l.b16 %v368
        %v622 = vpack.c.b16 %v621, %v620
        %v625 = vsel %vm474, %v593, 0
        %627 = vmatpush.bf16.msra.mxu0 0
        %628 = vmatpush.bf16.msra.mxu0 0
        %629 = vmatpush.bf16.msra.mxu0 0
        %630 = vmatpush.bf16.msra.mxu0 0
        %631 = vmatpush.bf16.msra.mxu0 0
        %632 = vmatpush.bf16.msra.mxu0 0
        %633 = vmatpush.bf16.msra.mxu0 0
        %634 = vmatpush.bf16.msra.mxu0 %v622
        %635 = vmatmul.bf16.gmra.mxu0 %v625
        %v636 = vpop.f32.mrf.mxu0
        %v637 = vadd.f32 0.0, %v636
        %v638 = vpop.f32.mrf.mxu0
        %639 = vdwg.mxu0
        %v642 = vunpack.c.l.b16 %v369
        %v643 = vunpack.c.l.b16 %v370
        %v644 = vpack.c.b16 %v643, %v642
        %v647 = vsel %vm474, %v594, 0
        %649 = vmatpush.bf16.msra.mxu0 0
        %650 = vmatpush.bf16.msra.mxu0 0
        %651 = vmatpush.bf16.msra.mxu0 0
        %652 = vmatpush.bf16.msra.mxu0 0
        %653 = vmatpush.bf16.msra.mxu0 0
        %654 = vmatpush.bf16.msra.mxu0 0
        %655 = vmatpush.bf16.msra.mxu0 0
        %656 = vmatpush.bf16.msra.mxu0 %v644
        %657 = vmatmul.bf16.gmra.mxu0 %v647
        %v658 = vpop.f32.mrf.mxu0
        %v659 = vadd.f32 0.0, %v658
        %v660 = vpop.f32.mrf.mxu0
        %661 = vdwg.mxu0
        %v664 = vunpack.c.l.b16 %v371
        %v665 = vunpack.c.l.b16 %v372
        %v666 = vpack.c.b16 %v665, %v664
        %v669 = vsel %vm474, %v595, 0
        %671 = vmatpush.bf16.msra.mxu0 0
        %672 = vmatpush.bf16.msra.mxu0 0
        %673 = vmatpush.bf16.msra.mxu0 0
        %674 = vmatpush.bf16.msra.mxu0 0
        %675 = vmatpush.bf16.msra.mxu0 0
        %676 = vmatpush.bf16.msra.mxu0 0
        %677 = vmatpush.bf16.msra.mxu0 0
        %678 = vmatpush.bf16.msra.mxu0 %v666
        %679 = vmatmul.bf16.gmra.mxu0 %v669
        %v680 = vpop.f32.mrf.mxu0
        %v681 = vadd.f32 0.0, %v680
        %v682 = vpop.f32.mrf.mxu0
        %683 = vdwg.mxu0
        %v684 = vadd.f32 %v588, %v615
        %v685 = vadd.f32 %v589, %v637
        %v686 = vadd.f32 %v590, %v659
        %v687 = vadd.f32 %v591, %v681
        %688 = vst.msk [vmem:[#allocation4] sm:$0xff] %vm378, %v684
        %689 = vst.msk [vmem:[#allocation4 + $0x8] sm:$0xff] %vm378, %v685
        %690 = vst.msk [vmem:[#allocation4 + $0x10] sm:$0xff] %vm378, %v686
        %691 = vst.msk [vmem:[#allocation4 + $0x18] sm:$0xff] %vm378, %v687
        %692 = vst.msk [vmem:[#allocation2] sm:$0xff] %vm559, %v487
        %693 = vst.msk [vmem:[#allocation2 + $0x8] sm:$0xff] %vm559, %v488
        %694 = vst.msk [vmem:[#allocation2 + $0x10] sm:$0xff] %vm559, %v489
        %695 = vst.msk [vmem:[#allocation2 + $0x18] sm:$0xff] %vm559, %v490
        // Predicated region
        $region86: #{tpu_custom_call.1} parent=76 // pred_check
          %p696 = pneg %p335
        $region87: #{tpu_custom_call.1} parent=76 // pred_check_branch
          %698 = sbr.rel (%p696) target = $region89
        $region88: #{tpu_custom_call.1} parent=76 // pred_region
          %v699 = vld [vmem:[#allocation4] sm:$0xff]
          %v700 = vld [vmem:[#allocation4 + $0x8] sm:$0xff]
          %v701 = vld [vmem:[#allocation4 + $0x10] sm:$0xff]
          %v702 = vld [vmem:[#allocation4 + $0x18] sm:$0xff]
          %v703 = vld [vmem:[#allocation3] sm:$0xff]
          %v704 = vld [vmem:[#allocation3 + $0x8] sm:$0xff]
          %v705 = vld [vmem:[#allocation3 + $0x10] sm:$0xff]
          %v706 = vld [vmem:[#allocation3 + $0x18] sm:$0xff]
          %v707 = vrcp.pop %v703
          %v708 = vrcp.pop %v704
          %v709 = vrcp.pop %v705
          %v710 = vrcp.pop %v706
          %712 = vset.pattern.permute.xlu0 0
          %713 = vperm.xlu0 %712, %v707
          %v714 = vpop.permute.xlu0 %713
          %717 = vset.pattern.permute.xlu0 0
          %718 = vperm.xlu0 %717, %v708
          %v719 = vpop.permute.xlu0 %718
          %722 = vset.pattern.permute.xlu0 0
          %723 = vperm.xlu0 %722, %v709
          %v724 = vpop.permute.xlu0 %723
          %727 = vset.pattern.permute.xlu0 0
          %728 = vperm.xlu0 %727, %v710
          %v729 = vpop.permute.xlu0 %728
          %v731 = vmul.f32 %v699, %v714
          %v732 = vmul.f32 %v700, %v719
          %v733 = vmul.f32 %v701, %v724
          %v734 = vmul.f32 %v702, %v729
          %v735 = vpack.c.bf16 %v731, %v731
          %v736 = vpack.c.bf16 %v732, %v732
          %v737 = vpack.c.bf16 %v733, %v733
          %v738 = vpack.c.bf16 %v734, %v734
          %v739 = vld [vmem:[%s3] sm:$0xf]
          %s740 = scalar_lea.vmem %s3, 4
          %v741 = vld [vmem:[%s740] sm:$0xf]
          %v743 = vsel %vm378, %v736, 0
          %vm745 = vcmask 1043456
          %v747 = vsel %vm745, %v741, 0
          %749 = vmatpush.bf16.msra.mxu0 0
          %750 = vmatpush.bf16.msra.mxu0 0
          %751 = vmatpush.bf16.msra.mxu0 0
          %752 = vmatpush.bf16.msra.mxu0 0
          %753 = vmatpush.bf16.msra.mxu0 0
          %754 = vmatpush.bf16.msra.mxu0 0
          %755 = vmatpush.bf16.msra.mxu0 0
          %756 = vmatpush.bf16.msra.mxu0 %v747
          %757 = vmatmul.bf16.gmra.mxu0 %v743
          %v758 = vpop.f32.mrf.mxu0
          %v759 = vadd.f32 0.0, %v758
          %v760 = vpop.f32.mrf.mxu0
          %761 = vdwg.mxu0
          %v763 = vsel %vm378, %v735, 0
          %v766 = vsel %vm745, %v739, 0
          %768 = vmatpush.bf16.msra.mxu0 0
          %769 = vmatpush.bf16.msra.mxu0 0
          %770 = vmatpush.bf16.msra.mxu0 0
          %771 = vmatpush.bf16.msra.mxu0 0
          %772 = vmatpush.bf16.msra.mxu0 0
          %773 = vmatpush.bf16.msra.mxu0 0
          %774 = vmatpush.bf16.msra.mxu0 0
          %775 = vmatpush.bf16.msra.mxu0 %v766
          %776 = vmatmul.bf16.gmra.mxu0 %v763
          %v777 = vpop.f32.mrf.mxu0
          %v778 = vadd.f32 %v759, %v777
          %v779 = vpop.f32.mrf.mxu0
          %780 = vdwg.mxu0
          %s781 = scalar_lea.vmem %s3, 8
          %v782 = vld [vmem:[%s781] sm:$0xf]
          %v784 = vsel %vm378, %v737, 0
          %v787 = vsel %vm745, %v782, 0
          %789 = vmatpush.bf16.msra.mxu0 0
          %790 = vmatpush.bf16.msra.mxu0 0
          %791 = vmatpush.bf16.msra.mxu0 0
          %792 = vmatpush.bf16.msra.mxu0 0
          %793 = vmatpush.bf16.msra.mxu0 0
          %794 = vmatpush.bf16.msra.mxu0 0
          %795 = vmatpush.bf16.msra.mxu0 0
          %796 = vmatpush.bf16.msra.mxu0 %v787
          %797 = vmatmul.bf16.gmra.mxu0 %v784
          %v798 = vpop.f32.mrf.mxu0
          %v799 = vadd.f32 0.0, %v798
          %v800 = vpop.f32.mrf.mxu0
          %801 = vdwg.mxu0
          %v802 = vadd.f32 %v778, %v799
          %s803 = scalar_lea.vmem %s3, 12
          %v804 = vld [vmem:[%s803] sm:$0xf]
          %v806 = vsel %vm378, %v738, 0
          %v809 = vsel %vm745, %v804, 0
          %811 = vmatpush.bf16.msra.mxu0 0
          %812 = vmatpush.bf16.msra.mxu0 0
          %813 = vmatpush.bf16.msra.mxu0 0
          %814 = vmatpush.bf16.msra.mxu0 0
          %815 = vmatpush.bf16.msra.mxu0 0
          %816 = vmatpush.bf16.msra.mxu0 0
          %817 = vmatpush.bf16.msra.mxu0 0
          %818 = vmatpush.bf16.msra.mxu0 %v809
          %819 = vmatmul.bf16.gmra.mxu0 %v806
          %v820 = vpop.f32.mrf.mxu0
          %v821 = vadd.f32 0.0, %v820
          %v822 = vpop.f32.mrf.mxu0
          %823 = vdwg.mxu0
          %v824 = vadd.f32 %v802, %v821
          %v825 = vld [vmem:[%s4] sm:$0x1]
          %v827 = vperm.slane %v825, 0
          %v829 = vadd.f32 %v824, %v827
          %vm830 = vcmask 261120
          %831 = vst.msk [vmem:[%s321] sm:$0xff] %vm830, %v829
        $region89: #{tpu_custom_call.1} parent=76 // pred_fallthru
          _
        %s832 = sand.u32 %s159, 1
        %s833 = scalar_lea.sflag [#allocation7], %s832
        %s834 = sand.u32 %s159, 1
        %s835 = smul.addr %s834, 8
        %s836 = scalar_lea.vmem [#allocation6], %s835
        // Predicated region
        $region90: #{tpu_custom_call.1} parent=76 // pred_check
          %p837 = pneg %p169
        $region91: #{tpu_custom_call.1} parent=76 // pred_check_branch
          %839 = sbr.rel (%p837) target = $region93
        $region92: #{tpu_custom_call.1} parent=76 // pred_region
          %841 = vsyncadd %s833, 0
          %s842 = smul.addr %s23, 8
          %s843 = scalar_lea.hbm %s5, %s842
          %s845 = sshll.u32 %s836, 4
          %s846 = int_to_ptr.vmem [resolvable:$true] %s845
          %s847 = sshll.u32 %s843, 4
          %s848 = int_to_ptr.hbm [resolvable:$true] %s847
          %850 = dma.vmem_to_hbm [thread:$0]  %s846, 128, %s848, %s833
        $region93: #{tpu_custom_call.1} parent=76 // pred_fallthru
          _
      $region77: #{tpu_custom_call.1} parent=5 // pred_fallthru
        _
      %p851 = scmp.le.s32.totalorder 2, %s14
      // Predicated region
      $region94: #{tpu_custom_call.1} parent=5 // pred_check
        %p852 = pneg %p851
      $region95: #{tpu_custom_call.1} parent=5 // pred_check_branch
        %854 = sbr.rel (%p852) target = $region97
      $region96: #{tpu_custom_call.1} parent=5 // pred_region
        %s855 = ssub.s32 %s14, 2
        // Predicated region
        $region98: #{tpu_custom_call.1} parent=96 // pred_check
          %p856 = pneg %p175
        $region99: #{tpu_custom_call.1} parent=96 // pred_check_branch
          %858 = sbr.rel (%p856) target = $region101
        $region100: #{tpu_custom_call.1} parent=96 // pred_region
          %s859 = sand.u32 %s160, 1
          %s860 = scalar_lea.sflag [#allocation7], %s859
          %s861 = sand.u32 %s160, 1
          %s862 = smul.addr %s861, 8
          %s863 = scalar_lea.vmem [#allocation6], %s862
          %865 = dma.done %s860, 128
        $region101: #{tpu_custom_call.1} parent=96 // pred_fallthru
          _
      $region97: #{tpu_custom_call.1} parent=5 // pred_fallthru
        _
    $region6: #{tpu_custom_call.1} parent=1 // loop_footer
      %s18 = sadd.s32 1, %s14
    $region7: #{tpu_custom_call.1} parent=1 // loop_footer_branch
      %13 = sbr.rel target = $region3
    $region8: #{tpu_custom_call.1} parent=1 // loop_exit
      _
    %866 = vsyncpa [#allocation7], 1
    %s867 = scalar_lea.sflag [#allocation7], 1
    %868 = vsyncpa %s867, 1

</llo_original>
